<compile_context>
chip_gen: v7x
topology: tpu7x:2x2x1
jax: 0.10.0
libtpu: 0.0.40
codegen_flags: <defaults>
</compile_context>

<pallas_src>
import functools

import jax
import jax.numpy as jnp
from jax.experimental import pallas as pl
from jax.experimental.pallas import tpu as pltpu


# --------------------------------------------------------------------------- #
# Kernel body (shared by the 1-D and 2-D affine paths).
# --------------------------------------------------------------------------- #
def _layernorm_kernel(x_ref, g_ref, b_ref, o_ref, *, eps, n):
    """Normalize the last axis; gamma/beta broadcast from the trailing dims.

    Single-pass statistics: var = (sumsq - sum^2/n) / (n-1). x is read for the
    stats and again for the output expression; no full-tile diff scratch.
    """
    x = x_ref[...].astype(jnp.float32)
    s = jnp.sum(x, axis=-1, keepdims=True)
    sq = jnp.sum(x * x, axis=-1, keepdims=True)
    mean = s * (1.0 / n)
    # torch.std: Bessel-corrected variance (N-1), then sqrt. Clamp tiny negative
    # values that the single-pass form can produce through cancellation.
    var = jnp.maximum((sq - s * mean) * (1.0 / (n - 1)), 0.0)
    denom = jnp.sqrt(var) + eps
    # EUP approximate reciprocal (otherwise-idle slot) + one Newton refinement
    # step to stay bit-close to the torch reference. Shape is (rows, 1): cheap.
    inv = pl.reciprocal(denom, approx=True)
    inv = inv * (2.0 - denom * inv)
    gamma = g_ref[...].astype(jnp.float32)
    beta = b_ref[...].astype(jnp.float32)
    y = (x - mean) * inv * gamma + beta
    o_ref[...] = y.astype(o_ref.dtype)


# --------------------------------------------------------------------------- #
# Sizing helpers (generation-aware).
# --------------------------------------------------------------------------- #
def _round_up(v, m):
    return (v + m - 1) // m * m


def _vmem_config():
    """Return (vmem_limit_bytes, block_budget_bytes) for this TPU generation."""
    try:
        phys = int(pltpu.get_tpu_info().vmem_capacity_bytes)
    except Exception:
        phys = 64 * 1024 * 1024  # conservative: v7x per-TensorCore VMEM
    if phys >= 128 * 1024 * 1024:      # v5e / v6e
        limit = 64 * 1024 * 1024
    else:                               # v7x (64 MiB physical per core)
        limit = 48 * 1024 * 1024
    # Half of the scoped limit goes to the pipelined blocks; the rest is
    # headroom for compiler scratch and intermediates not captured per-row.
    return limit, limit // 2


def _choose_block_rows(rows, lane, io_itemsize, budget_bytes, *, min_steps=4):
    """Largest 8-aligned row tile whose pipelined footprint fits the budget.

    Per-row footprint: 2x double-buffered input + 2x double-buffered output in
    the I/O dtype, plus ~2 f32 lane-rows for the in-kernel upcast/intermediates
    (the kernel always computes in f32, even for bf16 I/O).
    """
    rows_up = max(8, _round_up(rows, 8))
    per_row = 4 * lane * io_itemsize + 2 * lane * 4
    cap = max(8, (budget_bytes // per_row) // 8 * 8)
    block = min(cap, rows_up, 4096)
    # For large inputs, force several grid steps so dimension_semantics=("parallel",)
    # can shard across v7x's two TensorCores and prefetch/writeback overlap exists.
    if rows_up >= min_steps * 16:
        block = min(block, _round_up(pl.cdiv(rows_up, min_steps), 8))
    return max(8, block)


def _invariant_spec(block_shape, index_map, single_buffer):
    """BlockSpec for a grid-invariant operand; single-buffered when supported."""
    if single_buffer:
        return pl.BlockSpec(block_shape, index_map, pipeline_mode=pl.Buffered(1))
    return pl.BlockSpec(block_shape, index_map)


# --------------------------------------------------------------------------- #
# 1-D affine path: LayerNorm(features) -- leading dims flattened to rows.
# --------------------------------------------------------------------------- #
def _layer_norm_rows(x2d, gamma, beta, eps, block_rows, single_buffer):
    rows, features = x2d.shape
    itemsize = jnp.dtype(x2d.dtype).itemsize
    vmem_limit, budget = _vmem_config()
    if block_rows is None:
        block_rows = _choose_block_rows(rows, features, itemsize, budget)

    g2 = gamma.reshape(1, features)
    b2 = beta.reshape(1, features)

    # Ragged grid: no pad / slice copies. OOB rows of the last block are
    # garbage-but-masked; normalization is strictly per-row so that is safe.
    grid = (pl.cdiv(rows, block_rows),)

    cost = pl.CostEstimate(
        flops=7 * rows * features,
        transcendentals=2 * rows,
        bytes_accessed=(2 * rows * features * itemsize
                        + 2 * features * jnp.dtype(gamma.dtype).itemsize),
    )

    return pl.pallas_call(
        functools.partial(_layernorm_kernel, eps=eps, n=features),
        out_shape=jax.ShapeDtypeStruct((rows, features), x2d.dtype),
        grid_spec=pltpu.PrefetchScalarGridSpec(
            num_scalar_prefetch=0,
            grid=grid,
            in_specs=[
                pl.BlockSpec((block_rows, features), lambda i: (i, 0)),
                _invariant_spec((1, features), lambda i: (0, 0), single_buffer),
                _invariant_spec((1, features), lambda i: (0, 0), single_buffer),
            ],
            out_specs=pl.BlockSpec((block_rows, features), lambda i: (i, 0)),
        ),
        compiler_params=pltpu.CompilerParams(
            dimension_semantics=("parallel",),
            vmem_limit_bytes=vmem_limit,
        ),
        cost_estimate=cost,
    )(x2d, g2, b2)


# --------------------------------------------------------------------------- #
# 2-D affine path: LayerNorm([N_filt, T]) -- SincNet's inner layer norms.
# --------------------------------------------------------------------------- #
def _layer_norm_2d_affine(x, gamma, beta, eps, single_buffer):
    n_filt, t = gamma.shape
    lead = 1
    for d in x.shape[:-2]:
        lead *= int(d)
    x3 = x.reshape(lead, n_filt, t)
    itemsize = jnp.dtype(x.dtype).itemsize
    vmem_limit, budget = _vmem_config()

    # Block over the filter axis; the lead (batch) grid axis already provides
    # multiple steps for megacore sharding / pipelining.
    per_row = 4 * t * itemsize + 2 * t * 4
    cap = max(8, (budget // per_row) // 8 * 8)
    if n_filt <= cap:
        block_nf = n_filt          # full axis: any size allowed when full-dim
    else:
        block_nf = cap             # multiple of 8; ragged last block is masked
    n_f_blocks = pl.cdiv(n_filt, block_nf)
    grid = (lead, n_f_blocks)

    # gamma/beta are only grid-invariant if the filter axis is not split.
    invariant = single_buffer and (n_f_blocks == 1)

    cost = pl.CostEstimate(
        flops=7 * lead * n_filt * t,
        transcendentals=2 * lead * n_filt,
        bytes_accessed=(2 * lead * n_filt * t * itemsize
                        + 2 * n_filt * t * jnp.dtype(gamma.dtype).itemsize),
    )

    out = pl.pallas_call(
        functools.partial(_layernorm_kernel, eps=eps, n=t),
        out_shape=jax.ShapeDtypeStruct((lead, n_filt, t), x.dtype),
        grid_spec=pltpu.PrefetchScalarGridSpec(
            num_scalar_prefetch=0,
            grid=grid,
            in_specs=[
                pl.BlockSpec((1, block_nf, t), lambda b, f: (b, f, 0)),
                _invariant_spec((block_nf, t), lambda b, f: (f, 0), invariant),
                _invariant_spec((block_nf, t), lambda b, f: (f, 0), invariant),
            ],
            out_specs=pl.BlockSpec((1, block_nf, t), lambda b, f: (b, f, 0)),
        ),
        compiler_params=pltpu.CompilerParams(
            dimension_semantics=("parallel", "parallel"),
            vmem_limit_bytes=vmem_limit,
        ),
        cost_estimate=cost,
    )(x3, gamma, beta)
    return out.reshape(x.shape)


# --------------------------------------------------------------------------- #
# Public wrapper.
# --------------------------------------------------------------------------- #
def layer_norm(x, gamma, beta, eps=1e-6, *, block_rows=None):
    """gamma * (x - mean(-1)) / (std(-1, unbiased) + eps) + beta.

    gamma/beta may be 1-D (LayerNorm(features), e.g. SincNet's ln0) or 2-D
    (LayerNorm([N_filt, T]), SincNet's inner layer norms).
    """
    if x.shape[-1] < 2:
        # torch.std over a single element divides by (N-1)==0 -> NaN; fail loudly.
        raise ValueError("LayerNorm over a single-element last axis is undefined (torch.std is NaN).")
    gamma = jnp.asarray(gamma)
    beta = jnp.asarray(beta)

    def run(single_buffer):
        if gamma.ndim == 1:
            assert gamma.shape == (x.shape[-1],) and beta.shape == gamma.shape
            x2d = x.reshape(-1, x.shape[-1])
            out = _layer_norm_rows(x2d, gamma, beta, eps, block_rows, single_buffer)
            return out.reshape(x.shape)
        if gamma.ndim == 2:
            assert gamma.shape == tuple(x.shape[-2:]) and beta.shape == gamma.shape
            return _layer_norm_2d_affine(x, gamma, beta, eps, single_buffer)
        raise ValueError("gamma/beta must be 1-D or 2-D")

    try:
        return run(single_buffer=True)
    except Exception:
        # Fallback: some JAX builds reject pipeline_mode=pl.Buffered(1) for
        # grid-invariant operands. Default double-buffering only costs a few
        # KiB of VMEM and is semantically identical.
        return run(single_buffer=False)


# --------------------------------------------------------------------------- #
# Pure-JAX reference (mirrors the PyTorch module exactly).
# --------------------------------------------------------------------------- #
def _reference(x, gamma, beta, eps=1e-6):
    x32 = x.astype(jnp.float32)
    mean = jnp.mean(x32, axis=-1, keepdims=True)
    std = jnp.sqrt(jnp.var(x32, axis=-1, keepdims=True, ddof=1))  # unbiased, like torch.std
    return gamma.astype(jnp.float32) * (x32 - mean) / (std + eps) + beta.astype(jnp.float32)


if __name__ == "__main__":
    key = jax.random.PRNGKey(0)
    k1, k2, k3, k4 = jax.random.split(key, 4)

    # Case 1: input-layer LayerNorm(features) (ln0 form), 1-D gamma/beta.
    x1 = jax.random.normal(k1, (4, 8, 256), dtype=jnp.float32)
    g1 = jnp.ones((256,), jnp.float32)     # nn.Parameter(torch.ones)
    b1 = jnp.zeros((256,), jnp.float32)    # nn.Parameter(torch.zeros)
    o1 = jax.block_until_ready(layer_norm(x1, g1, b1, eps=1e-6))
    assert o1.shape == x1.shape and o1.dtype == x1.dtype
    assert jnp.allclose(o1, _reference(x1, g1, b1), rtol=1e-4, atol=1e-4), "mismatch (case 1)"

    # Case 2: row count not a multiple of the tile -> ragged last block and
    # multiple grid steps (forced small tile); non-trivial affine params.
    x2 = jax.random.normal(k2, (3, 5, 384), dtype=jnp.float32)
    g2 = 1.0 + 0.1 * jax.random.normal(jax.random.PRNGKey(7), (384,), dtype=jnp.float32)
    b2 = 0.1 * jax.random.normal(jax.random.PRNGKey(8), (384,), dtype=jnp.float32)
    o2 = jax.block_until_ready(layer_norm(x2, g2, b2, eps=1e-6, block_rows=8))
    assert o2.shape == x2.shape and o2.dtype == x2.dtype
    assert jnp.allclose(o2, _reference(x2, g2, b2), rtol=1e-4, atol=1e-4), "mismatch (case 2)"

    # Case 3: SincNet inner LayerNorm([N_filt, T]) with 2-D gamma/beta.
    x3 = jax.random.normal(k3, (2, 12, 256), dtype=jnp.float32)
    g3 = 1.0 + 0.1 * jax.random.normal(jax.random.PRNGKey(9), (12, 256), dtype=jnp.float32)
    b3 = 0.1 * jax.random.normal(jax.random.PRNGKey(10), (12, 256), dtype=jnp.float32)
    o3 = jax.block_until_ready(layer_norm(x3, g3, b3, eps=1e-6))
    assert o3.shape == x3.shape and o3.dtype == x3.dtype
    assert jnp.allclose(o3, _reference(x3, g3, b3), rtol=1e-4, atol=1e-4), "mismatch (case 3)"

    # Case 4: bf16 I/O (halves HBM bytes); math stays f32 inside the kernel.
    x4 = jax.random.normal(k4, (4, 8, 256), dtype=jnp.float32).astype(jnp.bfloat16)
    o4 = jax.block_until_ready(layer_norm(x4, g1, b1, eps=1e-6))
    assert o4.shape == x4.shape and o4.dtype == jnp.bfloat16
    ref4 = _reference(x4.astype(jnp.float32), g1, b1)
    assert jnp.allclose(o4.astype(jnp.float32), ref4, rtol=2e-2, atol=2e-2), "mismatch (case 4)"

    print("KERNEL_OK")
</pallas_src>

<mosaic_0001>
module attributes {stable_mosaic.version = 11 : i64} {
  func.func @_layernorm_kernel(%arg0: i32, %arg1: memref<32x256xf32, #tpu.memory_space<vmem>>, %arg2: memref<1x256xf32, #tpu.memory_space<vmem>>, %arg3: memref<1x256xf32, #tpu.memory_space<vmem>>, %arg4: memref<32x256xf32, #tpu.memory_space<vmem>>) attributes {dimension_semantics = [#tpu.dimension_semantics<parallel>], iteration_bounds = array<i64: 1>, scalar_prefetch = 0 : i64, scratch_operands = 0 : i64, tpu.core_type = #tpu.core_type<tc>, window_params = [{transform_indices = @transform_0, window_bounds = array<i64: 32, 256>}, {pipeline_mode = #tpu.pipeline_mode<synchronous>, transform_indices = @transform_1, window_bounds = array<i64: 1, 256>}, {pipeline_mode = #tpu.pipeline_mode<synchronous>, transform_indices = @transform_2, window_bounds = array<i64: 1, 256>}, {transform_indices = @transform_3, window_bounds = array<i64: 32, 256>}]} {
    %c0 = arith.constant 0 : index
    %c0_0 = arith.constant 0 : index
    %0 = vector.load %arg1[%c0, %c0_0] : memref<32x256xf32, #tpu.memory_space<vmem>>, vector<32x256xf32>
    %cst = arith.constant dense<0.000000e+00> : vector<32xf32>
    %1 = vector.multi_reduction <add>, %0, %cst [1] : vector<32x256xf32> to vector<32xf32>
    %2 = vector.shape_cast %1 : vector<32xf32> to vector<32x1xf32>
    %3 = arith.mulf %0, %0 : vector<32x256xf32>
    %cst_1 = arith.constant dense<0.000000e+00> : vector<32xf32>
    %4 = vector.multi_reduction <add>, %3, %cst_1 [1] : vector<32x256xf32> to vector<32xf32>
    %5 = vector.shape_cast %4 : vector<32xf32> to vector<32x1xf32>
    %cst_2 = arith.constant 3.906250e-03 : f32
    %6 = vector.broadcast %cst_2 : f32 to vector<32x1xf32>
    %7 = arith.mulf %2, %6 : vector<32x1xf32>
    %8 = arith.mulf %2, %7 : vector<32x1xf32>
    %9 = arith.subf %5, %8 : vector<32x1xf32>
    %cst_3 = arith.constant 0.00392156886 : f32
    %10 = vector.broadcast %cst_3 : f32 to vector<32x1xf32>
    %11 = arith.mulf %9, %10 : vector<32x1xf32>
    %cst_4 = arith.constant 0.000000e+00 : f32
    %12 = vector.broadcast %cst_4 : f32 to vector<32x1xf32>
    %13 = arith.maximumf %11, %12 : vector<32x1xf32>
    %14 = math.sqrt %13 : vector<32x1xf32>
    %cst_5 = arith.constant 9.99999997E-7 : f32
    %15 = vector.broadcast %cst_5 : f32 to vector<32x1xf32>
    %16 = arith.addf %14, %15 : vector<32x1xf32>
    %17 = tpu.reciprocal %16 {approx = true} : vector<32x1xf32> -> vector<32x1xf32>
    %18 = arith.mulf %16, %17 : vector<32x1xf32>
    %cst_6 = arith.constant 2.000000e+00 : f32
    %19 = vector.broadcast %cst_6 : f32 to vector<32x1xf32>
    %20 = arith.subf %19, %18 : vector<32x1xf32>
    %21 = arith.mulf %17, %20 : vector<32x1xf32>
    %c0_7 = arith.constant 0 : index
    %c0_8 = arith.constant 0 : index
    %22 = vector.load %arg2[%c0_7, %c0_8] : memref<1x256xf32, #tpu.memory_space<vmem>>, vector<1x256xf32>
    %c0_9 = arith.constant 0 : index
    %c0_10 = arith.constant 0 : index
    %23 = vector.load %arg3[%c0_9, %c0_10] : memref<1x256xf32, #tpu.memory_space<vmem>>, vector<1x256xf32>
    %24 = vector.broadcast %7 : vector<32x1xf32> to vector<32x256xf32>
    %25 = arith.subf %0, %24 : vector<32x256xf32>
    %26 = vector.broadcast %21 : vector<32x1xf32> to vector<32x256xf32>
    %27 = arith.mulf %25, %26 : vector<32x256xf32>
    %28 = vector.broadcast %22 : vector<1x256xf32> to vector<32x256xf32>
    %29 = arith.mulf %27, %28 : vector<32x256xf32>
    %30 = vector.broadcast %23 : vector<1x256xf32> to vector<32x256xf32>
    %31 = arith.addf %29, %30 : vector<32x256xf32>
    %c0_11 = arith.constant 0 : index
    %c0_12 = arith.constant 0 : index
    %32 = vector.load %arg4[%c0_11, %c0_12] : memref<32x256xf32, #tpu.memory_space<vmem>>, vector<32x256xf32>
    tpu.vector_store %arg4[%c0_11, %c0_12], %31 {strides = array<i32>} : memref<32x256xf32, #tpu.memory_space<vmem>>, vector<32x256xf32>,
    return
  }
  func.func @transform_0(%arg0: i32) -> (i32, i32) {
    %c0_i32 = arith.constant 0 : i32
    %c0_i32_0 = arith.constant 0 : i32
    return %arg0, %c0_i32 : i32, i32
  }
  func.func @transform_1(%arg0: i32) -> (i32, i32) {
    %c0_i32 = arith.constant 0 : i32
    %c0_i32_0 = arith.constant 0 : i32
    %c0_i32_1 = arith.constant 0 : i32
    return %c0_i32, %c0_i32_0 : i32, i32
  }
  func.func @transform_2(%arg0: i32) -> (i32, i32) {
    %c0_i32 = arith.constant 0 : i32
    %c0_i32_0 = arith.constant 0 : i32
    %c0_i32_1 = arith.constant 0 : i32
    return %c0_i32, %c0_i32_0 : i32, i32
  }
  func.func @transform_3(%arg0: i32) -> (i32, i32) {
    %c0_i32 = arith.constant 0 : i32
    %c0_i32_0 = arith.constant 0 : i32
    return %arg0, %c0_i32 : i32, i32
  }
}

module attributes {stable_mosaic.version = 11 : i64} {
  func.func @_layernorm_kernel(%arg0: i32, %arg1: memref<32x256xf32, #tpu.memory_space<vmem>>, %arg2: memref<1x256xf32, #tpu.memory_space<vmem>>, %arg3: memref<1x256xf32, #tpu.memory_space<vmem>>, %arg4: memref<32x256xf32, #tpu.memory_space<vmem>>) attributes {dimension_semantics = [#tpu.dimension_semantics<parallel>], iteration_bounds = array<i64: 1>, scalar_prefetch = 0 : i64, scratch_operands = 0 : i64, tpu.core_type = #tpu.core_type<tc>, window_params = [{transform_indices = @transform_0, window_bounds = array<i64: 32, 256>}, {pipeline_mode = #tpu.pipeline_mode<synchronous>, transform_indices = @transform_1, window_bounds = array<i64: 1, 256>}, {pipeline_mode = #tpu.pipeline_mode<synchronous>, transform_indices = @transform_2, window_bounds = array<i64: 1, 256>}, {transform_indices = @transform_3, window_bounds = array<i64: 32, 256>}]} {
    %c0 = arith.constant 0 : index
    %c0_0 = arith.constant 0 : index
    %0 = vector.load %arg1[%c0, %c0_0] : memref<32x256xf32, #tpu.memory_space<vmem>>, vector<32x256xf32>
    %cst = arith.constant dense<0.000000e+00> : vector<32xf32>
    %1 = vector.multi_reduction <add>, %0, %cst [1] : vector<32x256xf32> to vector<32xf32>
    %2 = vector.shape_cast %1 : vector<32xf32> to vector<32x1xf32>
    %3 = arith.mulf %0, %0 : vector<32x256xf32>
    %cst_1 = arith.constant dense<0.000000e+00> : vector<32xf32>
    %4 = vector.multi_reduction <add>, %3, %cst_1 [1] : vector<32x256xf32> to vector<32xf32>
    %5 = vector.shape_cast %4 : vector<32xf32> to vector<32x1xf32>
    %cst_2 = arith.constant 3.906250e-03 : f32
    %6 = vector.broadcast %cst_2 : f32 to vector<32x1xf32>
    %7 = arith.mulf %2, %6 : vector<32x1xf32>
    %8 = arith.mulf %2, %7 : vector<32x1xf32>
    %9 = arith.subf %5, %8 : vector<32x1xf32>
    %cst_3 = arith.constant 0.00392156886 : f32
    %10 = vector.broadcast %cst_3 : f32 to vector<32x1xf32>
    %11 = arith.mulf %9, %10 : vector<32x1xf32>
    %cst_4 = arith.constant 0.000000e+00 : f32
    %12 = vector.broadcast %cst_4 : f32 to vector<32x1xf32>
    %13 = arith.maximumf %11, %12 : vector<32x1xf32>
    %14 = math.sqrt %13 : vector<32x1xf32>
    %cst_5 = arith.constant 9.99999997E-7 : f32
    %15 = vector.broadcast %cst_5 : f32 to vector<32x1xf32>
    %16 = arith.addf %14, %15 : vector<32x1xf32>
    %17 = tpu.reciprocal %16 {approx = true} : vector<32x1xf32> -> vector<32x1xf32>
    %18 = arith.mulf %16, %17 : vector<32x1xf32>
    %cst_6 = arith.constant 2.000000e+00 : f32
    %19 = vector.broadcast %cst_6 : f32 to vector<32x1xf32>
    %20 = arith.subf %19, %18 : vector<32x1xf32>
    %21 = arith.mulf %17, %20 : vector<32x1xf32>
    %c0_7 = arith.constant 0 : index
    %c0_8 = arith.constant 0 : index
    %22 = vector.load %arg2[%c0_7, %c0_8] : memref<1x256xf32, #tpu.memory_space<vmem>>, vector<1x256xf32>
    %c0_9 = arith.constant 0 : index
    %c0_10 = arith.constant 0 : index
    %23 = vector.load %arg3[%c0_9, %c0_10] : memref<1x256xf32, #tpu.memory_space<vmem>>, vector<1x256xf32>
    %24 = vector.broadcast %7 : vector<32x1xf32> to vector<32x256xf32>
    %25 = arith.subf %0, %24 : vector<32x256xf32>
    %26 = vector.broadcast %21 : vector<32x1xf32> to vector<32x256xf32>
    %27 = arith.mulf %25, %26 : vector<32x256xf32>
    %28 = vector.broadcast %22 : vector<1x256xf32> to vector<32x256xf32>
    %29 = arith.mulf %27, %28 : vector<32x256xf32>
    %30 = vector.broadcast %23 : vector<1x256xf32> to vector<32x256xf32>
    %31 = arith.addf %29, %30 : vector<32x256xf32>
    %c0_11 = arith.constant 0 : index
    %c0_12 = arith.constant 0 : index
    %32 = vector.load %arg4[%c0_11, %c0_12] : memref<32x256xf32, #tpu.memory_space<vmem>>, vector<32x256xf32>
    tpu.vector_store %arg4[%c0_11, %c0_12], %31 {strides = array<i32>} : memref<32x256xf32, #tpu.memory_space<vmem>>, vector<32x256xf32>,
    return
  }
  func.func @transform_0(%arg0: i32) -> (i32, i32) {
    %c0_i32 = arith.constant 0 : i32
    %c0_i32_0 = arith.constant 0 : i32
    return %arg0, %c0_i32 : i32, i32
  }
  func.func @transform_1(%arg0: i32) -> (i32, i32) {
    %c0_i32 = arith.constant 0 : i32
    %c0_i32_0 = arith.constant 0 : i32
    %c0_i32_1 = arith.constant 0 : i32
    return %c0_i32, %c0_i32_0 : i32, i32
  }
  func.func @transform_2(%arg0: i32) -> (i32, i32) {
    %c0_i32 = arith.constant 0 : i32
    %c0_i32_0 = arith.constant 0 : i32
    %c0_i32_1 = arith.constant 0 : i32
    return %c0_i32, %c0_i32_0 : i32, i32
  }
  func.func @transform_3(%arg0: i32) -> (i32, i32) {
    %c0_i32 = arith.constant 0 : i32
    %c0_i32_0 = arith.constant 0 : i32
    return %arg0, %c0_i32 : i32, i32
  }
}

</mosaic_0001>

<llo_original>
// kernel: tpu_custom_call.1
$region0: #{tpu_custom_call.1}
  #allocation0 [shape = 'u32[]', space=smem, size = 0x4, offset = 0x4, fixed_abs, tag = 'smem constant byte address 0x4 - core index']
  #allocation1 [shape = 'u32[144,128]{1,0:T(1,128)}', space=vmem, size = 0x12000, scoped, tag = 'internal scratch']
  %s0 = inlined_call_operand.hbm [shape: f32[32,256], index: 0, kind: input, shape index: {}]
  %s1 = inlined_call_operand.vmem [shape: f32[1,256], index: 1, kind: input, shape index: {}]
  %s2 = inlined_call_operand.vmem [shape: f32[1,256], index: 2, kind: input, shape index: {}]
  %s3 = inlined_call_operand.hbm [shape: f32[32,256], index: 3, kind: output, shape index: {}]
  %s4 = sld [smem:[#allocation0]]
  $region26: #{tpu_custom_call.1} parent=0
    _
  %s6 = ssub.s32 1, %s4
  %s7 = scalar_select 0, %s6, %s4
  $region1: #{tpu_custom_call.1} parent=0
    #allocation2 [shape = 'u8[32768]{0}', space=vmem, size = 0x8000, scoped, tag = 'input window, operand 0, single buffered']
    #allocation3 [shape = 's32[1]{0}', space=sflag, size = 0x4, scoped, tag = 'scoped memory for tpu_custom_call.1']
    #allocation4 [shape = 's32[1]{0}', space=sflag, size = 0x4, scoped, tag = 'scoped memory for tpu_custom_call.1']
    #allocation5 [shape = 'u8[32768]{0}', space=vmem, size = 0x8000, scoped, tag = 'output window, operand 0, single buffered']
    %8 = vsyncpa [#allocation3], 0
    %9 = vsyncpa [#allocation4], 0
    // Predicated region
    $region2: #{tpu_custom_call.1} parent=1 // pred_check
      _
    $region3: #{tpu_custom_call.1} parent=1 // pred_check_branch
      %11 = sbr.rel (0) target = $region5
    $region4: #{tpu_custom_call.1} parent=1 // pred_region
      %s13 = ssub.s32 1024, 1024
      %14 = vsyncadd [#allocation3], %s13
      %s15 = sshll.u32 [#allocation2], 4
      %s16 = int_to_ptr.vmem [resolvable:$true] %s15
      %21 = dma.hbm_to_vmem [thread:$0]  %s0, 1024, %s16, [#allocation3], 256, 256, 16
    $region5: #{tpu_custom_call.1} parent=1 // pred_fallthru
      _
    // Predicated region
    $region6: #{tpu_custom_call.1} parent=1 // pred_check
      _
    $region7: #{tpu_custom_call.1} parent=1 // pred_check_branch
      %23 = sbr.rel (0) target = $region9
    $region8: #{tpu_custom_call.1} parent=1 // pred_region
      _
    $region9: #{tpu_custom_call.1} parent=1 // pred_fallthru
      _
    // Predicated region
    $region10: #{tpu_custom_call.1} parent=1 // pred_check
      _
    $region11: #{tpu_custom_call.1} parent=1 // pred_check_branch
      %25 = sbr.rel (0) target = $region13
    $region12: #{tpu_custom_call.1} parent=1 // pred_region
      _
    $region13: #{tpu_custom_call.1} parent=1 // pred_fallthru
      _
    // Predicated region
    $region14: #{tpu_custom_call.1} parent=1 // pred_check
      _
    $region15: #{tpu_custom_call.1} parent=1 // pred_check_branch
      %27 = sbr.rel (0) target = $region17
    $region16: #{tpu_custom_call.1} parent=1 // pred_region
      %28 = dma.done [#allocation3], 1024
    $region17: #{tpu_custom_call.1} parent=1 // pred_fallthru
      _
    %v29 = vld [vmem:[#allocation2] sm:$0xff]
    %v30 = vld [vmem:[#allocation2 + $0x8] sm:$0xff]
    %v31 = vld [vmem:[#allocation2 + $0x10] sm:$0xff]
    %v32 = vld [vmem:[#allocation2 + $0x18] sm:$0xff]
    %v33 = vld [vmem:[#allocation2 + $0x20] sm:$0xff]
    %v34 = vld [vmem:[#allocation2 + $0x28] sm:$0xff]
    %v35 = vld [vmem:[#allocation2 + $0x30] sm:$0xff]
    %v36 = vld [vmem:[#allocation2 + $0x38] sm:$0xff]
    %v37 = vadd.f32 %v29, %v30
    %38 = vadd.xlane.f32.xlu0 %v37
    %v39 = vpop.xlane.xlu0 %38
    %v40 = vadd.f32 %v31, %v32
    %41 = vadd.xlane.f32.xlu0 %v40
    %v42 = vpop.xlane.xlu0 %41
    %v43 = vadd.f32 %v33, %v34
    %44 = vadd.xlane.f32.xlu0 %v43
    %v45 = vpop.xlane.xlu0 %44
    %v46 = vadd.f32 %v35, %v36
    %47 = vadd.xlane.f32.xlu0 %v46
    %v48 = vpop.xlane.xlu0 %47
    %v49 = vmul.f32 %v29, %v29
    %v50 = vmul.f32 %v30, %v30
    %v51 = vmul.f32 %v31, %v31
    %v52 = vmul.f32 %v32, %v32
    %v53 = vmul.f32 %v33, %v33
    %v54 = vmul.f32 %v34, %v34
    %v55 = vmul.f32 %v35, %v35
    %v56 = vmul.f32 %v36, %v36
    %v57 = vadd.f32 %v49, %v50
    %58 = vadd.xlane.f32.xlu0 %v57
    %v59 = vpop.xlane.xlu0 %58
    %v60 = vadd.f32 %v51, %v52
    %61 = vadd.xlane.f32.xlu0 %v60
    %v62 = vpop.xlane.xlu0 %61
    %v63 = vadd.f32 %v53, %v54
    %64 = vadd.xlane.f32.xlu0 %v63
    %v65 = vpop.xlane.xlu0 %64
    %v66 = vadd.f32 %v55, %v56
    %67 = vadd.xlane.f32.xlu0 %v66
    %v68 = vpop.xlane.xlu0 %67
    %v69 = vmul.f32 %v39, 0.00390625
    %v70 = vmul.f32 %v42, 0.00390625
    %v71 = vmul.f32 %v45, 0.00390625
    %v72 = vmul.f32 %v48, 0.00390625
    %v73 = vmul.f32 %v39, %v69
    %v74 = vmul.f32 %v42, %v70
    %v75 = vmul.f32 %v45, %v71
    %v76 = vmul.f32 %v48, %v72
    %v77 = vsub.f32 %v59, %v73
    %v78 = vsub.f32 %v62, %v74
    %v79 = vsub.f32 %v65, %v75
    %v80 = vsub.f32 %v68, %v76
    %v81 = vmul.f32 %v77, 0.003921569
    %v82 = vmul.f32 %v78, 0.003921569
    %v83 = vmul.f32 %v79, 0.003921569
    %v84 = vmul.f32 %v80, 0.003921569
    %v85 = vmax.f32 %v81, 0.0
    %v86 = vmax.f32 %v82, 0.0
    %v87 = vmax.f32 %v83, 0.0
    %v88 = vmax.f32 %v84, 0.0
    %v89 = vrsqrt.pop %v85
    %v90 = vmul.f32 %v85, %v89
    %vm91 = vcmp.eq.f32.partialorder %v85, inf
    %v92 = vsel %vm91, %v85, %v90
    %vm93 = vcmp.eq.f32.partialorder %v85, 0.0
    %v94 = vand.u32 %v85, 2147483648
    %v95 = vsel %vm93, %v94, %v92
    %v96 = vrsqrt.pop %v86
    %v97 = vmul.f32 %v86, %v96
    %vm98 = vcmp.eq.f32.partialorder %v86, inf
    %v99 = vsel %vm98, %v86, %v97
    %vm100 = vcmp.eq.f32.partialorder %v86, 0.0
    %v101 = vand.u32 %v86, 2147483648
    %v102 = vsel %vm100, %v101, %v99
    %v103 = vrsqrt.pop %v87
    %v104 = vmul.f32 %v87, %v103
    %vm105 = vcmp.eq.f32.partialorder %v87, inf
    %v106 = vsel %vm105, %v87, %v104
    %vm107 = vcmp.eq.f32.partialorder %v87, 0.0
    %v108 = vand.u32 %v87, 2147483648
    %v109 = vsel %vm107, %v108, %v106
    %v110 = vrsqrt.pop %v88
    %v111 = vmul.f32 %v88, %v110
    %vm112 = vcmp.eq.f32.partialorder %v88, inf
    %v113 = vsel %vm112, %v88, %v111
    %vm114 = vcmp.eq.f32.partialorder %v88, 0.0
    %v115 = vand.u32 %v88, 2147483648
    %v116 = vsel %vm114, %v115, %v113
    %v117 = vadd.f32 %v95, 1e-06
    %v118 = vadd.f32 %v102, 1e-06
    %v119 = vadd.f32 %v109, 1e-06
    %v120 = vadd.f32 %v116, 1e-06
    %v121 = vrcp.pop %v117
    %v122 = vrcp.pop %v118
    %v123 = vrcp.pop %v119
    %v124 = vrcp.pop %v120
    %v125 = vmul.f32 %v117, %v121
    %v126 = vmul.f32 %v118, %v122
    %v127 = vmul.f32 %v119, %v123
    %v128 = vmul.f32 %v120, %v124
    %v129 = vsub.f32 2.0, %v125
    %v130 = vsub.f32 2.0, %v126
    %v131 = vsub.f32 2.0, %v127
    %v132 = vsub.f32 2.0, %v128
    %v133 = vmul.f32 %v121, %v129
    %v134 = vmul.f32 %v122, %v130
    %v135 = vmul.f32 %v123, %v131
    %v136 = vmul.f32 %v124, %v132
    %v137 = vld [vmem:[%s1] sm:$0x3]
    %v138 = vld [vmem:[%s2] sm:$0x3]
    %v139 = vsub.f32 %v29, %v69
    %v140 = vsub.f32 %v30, %v69
    %v141 = vsub.f32 %v31, %v70
    %v142 = vsub.f32 %v32, %v70
    %v143 = vsub.f32 %v33, %v71
    %v144 = vsub.f32 %v34, %v71
    %v145 = vsub.f32 %v35, %v72
    %v146 = vsub.f32 %v36, %v72
    %v147 = vmul.f32 %v139, %v133
    %v148 = vmul.f32 %v140, %v133
    %v149 = vmul.f32 %v141, %v134
    %v150 = vmul.f32 %v142, %v134
    %v151 = vmul.f32 %v143, %v135
    %v152 = vmul.f32 %v144, %v135
    %v153 = vmul.f32 %v145, %v136
    %v154 = vmul.f32 %v146, %v136
    %v156 = vlaneseq
    %v157 = vshrl.u32 %v156, 7
    %v158 = vsub.s32 0, %v157
    %v159 = vrot.slane %v137, %v158
    %v160 = vlaneseq
    %v161 = vshrl.u32 %v160, 7
    %v162 = vsub.s32 1, %v161
    %v163 = vrot.slane %v137, %v162
    %v166 = vmul.f32 %v147, %v159
    %v167 = vmul.f32 %v148, %v163
    %v168 = vmul.f32 %v149, %v159
    %v169 = vmul.f32 %v150, %v163
    %v170 = vmul.f32 %v151, %v159
    %v171 = vmul.f32 %v152, %v163
    %v172 = vmul.f32 %v153, %v159
    %v173 = vmul.f32 %v154, %v163
    %v175 = vlaneseq
    %v176 = vshrl.u32 %v175, 7
    %v177 = vsub.s32 0, %v176
    %v178 = vrot.slane %v138, %v177
    %v179 = vlaneseq
    %v180 = vshrl.u32 %v179, 7
    %v181 = vsub.s32 1, %v180
    %v182 = vrot.slane %v138, %v181
    %v185 = vadd.f32 %v166, %v178
    %v186 = vadd.f32 %v167, %v182
    %v187 = vadd.f32 %v168, %v178
    %v188 = vadd.f32 %v169, %v182
    %v189 = vadd.f32 %v170, %v178
    %v190 = vadd.f32 %v171, %v182
    %v191 = vadd.f32 %v172, %v178
    %v192 = vadd.f32 %v173, %v182
    %193 = vst [vmem:[#allocation5] sm:$0xff] %v185
    %194 = vst [vmem:[#allocation5 + $0x8] sm:$0xff] %v186
    %195 = vst [vmem:[#allocation5 + $0x10] sm:$0xff] %v187
    %196 = vst [vmem:[#allocation5 + $0x18] sm:$0xff] %v188
    %197 = vst [vmem:[#allocation5 + $0x20] sm:$0xff] %v189
    %198 = vst [vmem:[#allocation5 + $0x28] sm:$0xff] %v190
    %199 = vst [vmem:[#allocation5 + $0x30] sm:$0xff] %v191
    %200 = vst [vmem:[#allocation5 + $0x38] sm:$0xff] %v192
    // Predicated region
    $region18: #{tpu_custom_call.1} parent=1 // pred_check
      _
    $region19: #{tpu_custom_call.1} parent=1 // pred_check_branch
      %202 = sbr.rel (0) target = $region21
    $region20: #{tpu_custom_call.1} parent=1 // pred_region
      %s204 = ssub.s32 1024, 1024
      %205 = vsyncadd [#allocation4], %s204
      %s206 = sshll.u32 [#allocation5], 4
      %s207 = int_to_ptr.vmem [resolvable:$true] %s206
      %212 = dma.vmem_to_hbm [thread:$0]  %s207, 1024, %s3, [#allocation4], 256, 256, 16
    $region21: #{tpu_custom_call.1} parent=1 // pred_fallthru
      _
    // Predicated region
    $region22: #{tpu_custom_call.1} parent=1 // pred_check
      _
    $region23: #{tpu_custom_call.1} parent=1 // pred_check_branch
      %214 = sbr.rel (0) target = $region25
    $region24: #{tpu_custom_call.1} parent=1 // pred_region
      %215 = dma.done [#allocation4], 1024
    $region25: #{tpu_custom_call.1} parent=1 // pred_fallthru
      _
    %216 = vsyncpa [#allocation3], 1
    %217 = vsyncpa [#allocation4], 1

// kernel: tpu_custom_call.1
$region0: #{tpu_custom_call.1}
  #allocation0 [shape = 'u32[]', space=smem, size = 0x4, offset = 0x4, fixed_abs, tag = 'smem constant byte address 0x4 - core index']
  #allocation1 [shape = 'u32[144,128]{1,0:T(1,128)}', space=vmem, size = 0x12000, scoped, tag = 'internal scratch']
  %s0 = inlined_call_operand.hbm [shape: f32[32,256], index: 0, kind: input, shape index: {}]
  %s1 = inlined_call_operand.vmem [shape: f32[1,256], index: 1, kind: input, shape index: {}]
  %s2 = inlined_call_operand.vmem [shape: f32[1,256], index: 2, kind: input, shape index: {}]
  %s3 = inlined_call_operand.hbm [shape: f32[32,256], index: 3, kind: output, shape index: {}]
  %s4 = sld [smem:[#allocation0]]
  $region26: #{tpu_custom_call.1} parent=0
    _
  %s6 = ssub.s32 1, %s4
  %s7 = scalar_select 0, %s6, %s4
  $region1: #{tpu_custom_call.1} parent=0
    #allocation2 [shape = 'u8[32768]{0}', space=vmem, size = 0x8000, scoped, tag = 'input window, operand 0, single buffered']
    #allocation3 [shape = 's32[1]{0}', space=sflag, size = 0x4, scoped, tag = 'scoped memory for tpu_custom_call.1']
    #allocation4 [shape = 's32[1]{0}', space=sflag, size = 0x4, scoped, tag = 'scoped memory for tpu_custom_call.1']
    #allocation5 [shape = 'u8[32768]{0}', space=vmem, size = 0x8000, scoped, tag = 'output window, operand 0, single buffered']
    %8 = vsyncpa [#allocation3], 0
    %9 = vsyncpa [#allocation4], 0
    // Predicated region
    $region2: #{tpu_custom_call.1} parent=1 // pred_check
      _
    $region3: #{tpu_custom_call.1} parent=1 // pred_check_branch
      %11 = sbr.rel (0) target = $region5
    $region4: #{tpu_custom_call.1} parent=1 // pred_region
      %s13 = ssub.s32 1024, 1024
      %14 = vsyncadd [#allocation3], %s13
      %s15 = sshll.u32 [#allocation2], 4
      %s16 = int_to_ptr.vmem [resolvable:$true] %s15
      %21 = dma.hbm_to_vmem [thread:$0]  %s0, 1024, %s16, [#allocation3], 256, 256, 16
    $region5: #{tpu_custom_call.1} parent=1 // pred_fallthru
      _
    // Predicated region
    $region6: #{tpu_custom_call.1} parent=1 // pred_check
      _
    $region7: #{tpu_custom_call.1} parent=1 // pred_check_branch
      %23 = sbr.rel (0) target = $region9
    $region8: #{tpu_custom_call.1} parent=1 // pred_region
      _
    $region9: #{tpu_custom_call.1} parent=1 // pred_fallthru
      _
    // Predicated region
    $region10: #{tpu_custom_call.1} parent=1 // pred_check
      _
    $region11: #{tpu_custom_call.1} parent=1 // pred_check_branch
      %25 = sbr.rel (0) target = $region13
    $region12: #{tpu_custom_call.1} parent=1 // pred_region
      _
    $region13: #{tpu_custom_call.1} parent=1 // pred_fallthru
      _
    // Predicated region
    $region14: #{tpu_custom_call.1} parent=1 // pred_check
      _
    $region15: #{tpu_custom_call.1} parent=1 // pred_check_branch
      %27 = sbr.rel (0) target = $region17
    $region16: #{tpu_custom_call.1} parent=1 // pred_region
      %28 = dma.done [#allocation3], 1024
    $region17: #{tpu_custom_call.1} parent=1 // pred_fallthru
      _
    %v29 = vld [vmem:[#allocation2] sm:$0xff]
    %v30 = vld [vmem:[#allocation2 + $0x8] sm:$0xff]
    %v31 = vld [vmem:[#allocation2 + $0x10] sm:$0xff]
    %v32 = vld [vmem:[#allocation2 + $0x18] sm:$0xff]
    %v33 = vld [vmem:[#allocation2 + $0x20] sm:$0xff]
    %v34 = vld [vmem:[#allocation2 + $0x28] sm:$0xff]
    %v35 = vld [vmem:[#allocation2 + $0x30] sm:$0xff]
    %v36 = vld [vmem:[#allocation2 + $0x38] sm:$0xff]
    %v37 = vadd.f32 %v29, %v30
    %38 = vadd.xlane.f32.xlu0 %v37
    %v39 = vpop.xlane.xlu0 %38
    %v40 = vadd.f32 %v31, %v32
    %41 = vadd.xlane.f32.xlu0 %v40
    %v42 = vpop.xlane.xlu0 %41
    %v43 = vadd.f32 %v33, %v34
    %44 = vadd.xlane.f32.xlu0 %v43
    %v45 = vpop.xlane.xlu0 %44
    %v46 = vadd.f32 %v35, %v36
    %47 = vadd.xlane.f32.xlu0 %v46
    %v48 = vpop.xlane.xlu0 %47
    %v49 = vmul.f32 %v29, %v29
    %v50 = vmul.f32 %v30, %v30
    %v51 = vmul.f32 %v31, %v31
    %v52 = vmul.f32 %v32, %v32
    %v53 = vmul.f32 %v33, %v33
    %v54 = vmul.f32 %v34, %v34
    %v55 = vmul.f32 %v35, %v35
    %v56 = vmul.f32 %v36, %v36
    %v57 = vadd.f32 %v49, %v50
    %58 = vadd.xlane.f32.xlu0 %v57
    %v59 = vpop.xlane.xlu0 %58
    %v60 = vadd.f32 %v51, %v52
    %61 = vadd.xlane.f32.xlu0 %v60
    %v62 = vpop.xlane.xlu0 %61
    %v63 = vadd.f32 %v53, %v54
    %64 = vadd.xlane.f32.xlu0 %v63
    %v65 = vpop.xlane.xlu0 %64
    %v66 = vadd.f32 %v55, %v56
    %67 = vadd.xlane.f32.xlu0 %v66
    %v68 = vpop.xlane.xlu0 %67
    %v69 = vmul.f32 %v39, 0.00390625
    %v70 = vmul.f32 %v42, 0.00390625
    %v71 = vmul.f32 %v45, 0.00390625
    %v72 = vmul.f32 %v48, 0.00390625
    %v73 = vmul.f32 %v39, %v69
    %v74 = vmul.f32 %v42, %v70
    %v75 = vmul.f32 %v45, %v71
    %v76 = vmul.f32 %v48, %v72
    %v77 = vsub.f32 %v59, %v73
    %v78 = vsub.f32 %v62, %v74
    %v79 = vsub.f32 %v65, %v75
    %v80 = vsub.f32 %v68, %v76
    %v81 = vmul.f32 %v77, 0.003921569
    %v82 = vmul.f32 %v78, 0.003921569
    %v83 = vmul.f32 %v79, 0.003921569
    %v84 = vmul.f32 %v80, 0.003921569
    %v85 = vmax.f32 %v81, 0.0
    %v86 = vmax.f32 %v82, 0.0
    %v87 = vmax.f32 %v83, 0.0
    %v88 = vmax.f32 %v84, 0.0
    %v89 = vrsqrt.pop %v85
    %v90 = vmul.f32 %v85, %v89
    %vm91 = vcmp.eq.f32.partialorder %v85, inf
    %v92 = vsel %vm91, %v85, %v90
    %vm93 = vcmp.eq.f32.partialorder %v85, 0.0
    %v94 = vand.u32 %v85, 2147483648
    %v95 = vsel %vm93, %v94, %v92
    %v96 = vrsqrt.pop %v86
    %v97 = vmul.f32 %v86, %v96
    %vm98 = vcmp.eq.f32.partialorder %v86, inf
    %v99 = vsel %vm98, %v86, %v97
    %vm100 = vcmp.eq.f32.partialorder %v86, 0.0
    %v101 = vand.u32 %v86, 2147483648
    %v102 = vsel %vm100, %v101, %v99
    %v103 = vrsqrt.pop %v87
    %v104 = vmul.f32 %v87, %v103
    %vm105 = vcmp.eq.f32.partialorder %v87, inf
    %v106 = vsel %vm105, %v87, %v104
    %vm107 = vcmp.eq.f32.partialorder %v87, 0.0
    %v108 = vand.u32 %v87, 2147483648
    %v109 = vsel %vm107, %v108, %v106
    %v110 = vrsqrt.pop %v88
    %v111 = vmul.f32 %v88, %v110
    %vm112 = vcmp.eq.f32.partialorder %v88, inf
    %v113 = vsel %vm112, %v88, %v111
    %vm114 = vcmp.eq.f32.partialorder %v88, 0.0
    %v115 = vand.u32 %v88, 2147483648
    %v116 = vsel %vm114, %v115, %v113
    %v117 = vadd.f32 %v95, 1e-06
    %v118 = vadd.f32 %v102, 1e-06
    %v119 = vadd.f32 %v109, 1e-06
    %v120 = vadd.f32 %v116, 1e-06
    %v121 = vrcp.pop %v117
    %v122 = vrcp.pop %v118
    %v123 = vrcp.pop %v119
    %v124 = vrcp.pop %v120
    %v125 = vmul.f32 %v117, %v121
    %v126 = vmul.f32 %v118, %v122
    %v127 = vmul.f32 %v119, %v123
    %v128 = vmul.f32 %v120, %v124
    %v129 = vsub.f32 2.0, %v125
    %v130 = vsub.f32 2.0, %v126
    %v131 = vsub.f32 2.0, %v127
    %v132 = vsub.f32 2.0, %v128
    %v133 = vmul.f32 %v121, %v129
    %v134 = vmul.f32 %v122, %v130
    %v135 = vmul.f32 %v123, %v131
    %v136 = vmul.f32 %v124, %v132
    %v137 = vld [vmem:[%s1] sm:$0x3]
    %v138 = vld [vmem:[%s2] sm:$0x3]
    %v139 = vsub.f32 %v29, %v69
    %v140 = vsub.f32 %v30, %v69
    %v141 = vsub.f32 %v31, %v70
    %v142 = vsub.f32 %v32, %v70
    %v143 = vsub.f32 %v33, %v71
    %v144 = vsub.f32 %v34, %v71
    %v145 = vsub.f32 %v35, %v72
    %v146 = vsub.f32 %v36, %v72
    %v147 = vmul.f32 %v139, %v133
    %v148 = vmul.f32 %v140, %v133
    %v149 = vmul.f32 %v141, %v134
    %v150 = vmul.f32 %v142, %v134
    %v151 = vmul.f32 %v143, %v135
    %v152 = vmul.f32 %v144, %v135
    %v153 = vmul.f32 %v145, %v136
    %v154 = vmul.f32 %v146, %v136
    %v156 = vlaneseq
    %v157 = vshrl.u32 %v156, 7
    %v158 = vsub.s32 0, %v157
    %v159 = vrot.slane %v137, %v158
    %v160 = vlaneseq
    %v161 = vshrl.u32 %v160, 7
    %v162 = vsub.s32 1, %v161
    %v163 = vrot.slane %v137, %v162
    %v166 = vmul.f32 %v147, %v159
    %v167 = vmul.f32 %v148, %v163
    %v168 = vmul.f32 %v149, %v159
    %v169 = vmul.f32 %v150, %v163
    %v170 = vmul.f32 %v151, %v159
    %v171 = vmul.f32 %v152, %v163
    %v172 = vmul.f32 %v153, %v159
    %v173 = vmul.f32 %v154, %v163
    %v175 = vlaneseq
    %v176 = vshrl.u32 %v175, 7
    %v177 = vsub.s32 0, %v176
    %v178 = vrot.slane %v138, %v177
    %v179 = vlaneseq
    %v180 = vshrl.u32 %v179, 7
    %v181 = vsub.s32 1, %v180
    %v182 = vrot.slane %v138, %v181
    %v185 = vadd.f32 %v166, %v178
    %v186 = vadd.f32 %v167, %v182
    %v187 = vadd.f32 %v168, %v178
    %v188 = vadd.f32 %v169, %v182
    %v189 = vadd.f32 %v170, %v178
    %v190 = vadd.f32 %v171, %v182
    %v191 = vadd.f32 %v172, %v178
    %v192 = vadd.f32 %v173, %v182
    %193 = vst [vmem:[#allocation5] sm:$0xff] %v185
    %194 = vst [vmem:[#allocation5 + $0x8] sm:$0xff] %v186
    %195 = vst [vmem:[#allocation5 + $0x10] sm:$0xff] %v187
    %196 = vst [vmem:[#allocation5 + $0x18] sm:$0xff] %v188
    %197 = vst [vmem:[#allocation5 + $0x20] sm:$0xff] %v189
    %198 = vst [vmem:[#allocation5 + $0x28] sm:$0xff] %v190
    %199 = vst [vmem:[#allocation5 + $0x30] sm:$0xff] %v191
    %200 = vst [vmem:[#allocation5 + $0x38] sm:$0xff] %v192
    // Predicated region
    $region18: #{tpu_custom_call.1} parent=1 // pred_check
      _
    $region19: #{tpu_custom_call.1} parent=1 // pred_check_branch
      %202 = sbr.rel (0) target = $region21
    $region20: #{tpu_custom_call.1} parent=1 // pred_region
      %s204 = ssub.s32 1024, 1024
      %205 = vsyncadd [#allocation4], %s204
      %s206 = sshll.u32 [#allocation5], 4
      %s207 = int_to_ptr.vmem [resolvable:$true] %s206
      %212 = dma.vmem_to_hbm [thread:$0]  %s207, 1024, %s3, [#allocation4], 256, 256, 16
    $region21: #{tpu_custom_call.1} parent=1 // pred_fallthru
      _
    // Predicated region
    $region22: #{tpu_custom_call.1} parent=1 // pred_check
      _
    $region23: #{tpu_custom_call.1} parent=1 // pred_check_branch
      %214 = sbr.rel (0) target = $region25
    $region24: #{tpu_custom_call.1} parent=1 // pred_region
      %215 = dma.done [#allocation4], 1024
    $region25: #{tpu_custom_call.1} parent=1 // pred_fallthru
      _
    %216 = vsyncpa [#allocation3], 1
    %217 = vsyncpa [#allocation4], 1

</llo_original>
